<compile_context>
chip_gen: v7x
topology: tpu7x:2x2x1
jax: 0.10.0
libtpu: 0.0.40
codegen_flags: <defaults>
</compile_context>

<pallas_src>
import jax
import jax.numpy as jnp
from jax.experimental import pallas as pl
from jax.experimental.pallas import tpu as pltpu

_MIB = 1024 * 1024


def _round_up(x, m):
    return (x + m - 1) // m * m


def _cdiv(a, b):
    return -(-a // b)


# --------------------------------------------------------------------------- #
# Kernel
# --------------------------------------------------------------------------- #
def lw_head_kernel(x_ref, w1_ref, b1_ref, w2_ref, b2_ref, out_ref):
    # x_ref:  (tile_rows, H)  producer dtype (bf16 preferred)
    # w1_ref: (H, M) bf16     b1_ref: (1, M) f32
    # w2_ref: (M, T) bf16     b2_ref: (1, T) f32
    # out_ref:(tile_rows, T) f32
    x = x_ref[...].astype(jnp.bfloat16)        # no-op when the producer emits bf16
    h = jnp.dot(x, w1_ref[...], preferred_element_type=jnp.float32) + b1_ref[...]
    h = jnp.maximum(h, 0.0).astype(jnp.bfloat16)   # ReLU; Dropout == identity at eval
    out = jnp.dot(h, w2_ref[...], preferred_element_type=jnp.float32) + b2_ref[...]
    out_ref[...] = out.astype(out_ref.dtype)


# --------------------------------------------------------------------------- #
# Sizing helpers
# --------------------------------------------------------------------------- #
def _vmem_ceiling_bytes():
    # Generation-aware cap with compiler headroom:
    #   v5e/v6e (128 MiB physical) -> ~104 MiB; v7x (64 MiB physical) -> ~52 MiB.
    cap = None
    try:
        cap = getattr(pltpu.get_tpu_info(), "vmem_capacity_bytes", None)
    except Exception:
        cap = None
    if cap is None:
        cap = 64 * _MIB                      # conservative default
    if cap >= 96 * _MIB:
        return 104 * _MIB
    return 52 * _MIB


def _head_vmem_bytes(tile_rows, H, M, T, x_bytes):
    lanes = lambda d: _round_up(d, 128)
    # Pipelined I/O tiles (double-buffered).
    b = 2 * tile_rows * lanes(H) * x_bytes           # x tile
    b += 2 * tile_rows * lanes(T) * 4                # out tile (f32)
    # Resident weights / biases (budget 2 buffers in case single-buffering
    # via pl.Buffered(1) is unavailable in the installed jax).
    b += 2 * (_round_up(H, 16) * lanes(M) * 2 + _round_up(M, 16) * lanes(T) * 2)
    b += 2 * (8 * lanes(M) * 4 + 8 * lanes(T) * 4)
    # In-kernel intermediates: bf16 x, f32 + bf16 hidden, f32 pre-store output.
    b += tile_rows * lanes(H) * 2
    b += tile_rows * lanes(M) * (4 + 2)
    b += tile_rows * lanes(T) * 4
    return b


def _resident_spec(shape):
    """BlockSpec for an operand that never changes block index (weights/biases)."""
    index_map = lambda i: (0,) * len(shape)
    try:
        return pl.BlockSpec(shape, index_map, pipeline_mode=pl.Buffered(1))
    except Exception:  # older jax without pipeline_mode / Buffered
        return pl.BlockSpec(shape, index_map)


# --------------------------------------------------------------------------- #
# Fused head:  emissions = (ReLU(x @ W1 + b1)) @ W2 + b2
# --------------------------------------------------------------------------- #
def lw_head(x_tokens, w1, b1, w2, b2, *, tile_rows=4096, out_dtype=jnp.float32):
    """x_tokens: [N, H] (bf16 preferred; other dtypes cast in-kernel).
    w1: [H, M]  b1: [M]  w2: [M, T]  b2: [T]  (nn.Linear weights pre-transposed).
    Returns emissions [N, T] (f32 MXU accumulation inside)."""
    N, H = x_tokens.shape
    M = w1.shape[1]
    T = w2.shape[1]
    x_bytes = jnp.dtype(x_tokens.dtype).itemsize

    vmem_ceiling = _vmem_ceiling_bytes()

    # --- row-tile selection -------------------------------------------------
    tile_rows = int(tile_rows)
    # On large inputs keep >= ~8 grid steps (megacore sharding + pipeline overlap),
    # but never drop below 512 rows per tile.
    if N >= 8 * 512:
        tile_rows = min(tile_rows, max(512, _round_up(_cdiv(N, 8), 16)))
    tile_rows = min(tile_rows, _round_up(N, 16))
    tile_rows = max(16, _round_up(tile_rows, 16))
    # Shrink to fit the generation-aware VMEM ceiling (includes intermediates).
    while tile_rows > 16 and _head_vmem_bytes(tile_rows, H, M, T, x_bytes) > vmem_ceiling:
        tile_rows = max(16, _round_up(tile_rows // 2, 16))

    grid = (_cdiv(N, tile_rows),)
    budget = _head_vmem_bytes(tile_rows, H, M, T, x_bytes)
    vmem_limit = int(min(vmem_ceiling, max(32 * _MIB, int(1.25 * budget))))

    w1b = w1.astype(jnp.bfloat16)
    w2b = w2.astype(jnp.bfloat16)
    b1f = b1.astype(jnp.float32).reshape(1, M)
    b2f = b2.astype(jnp.float32).reshape(1, T)

    return pl.pallas_call(
        lw_head_kernel,
        out_shape=jax.ShapeDtypeStruct((N, T), out_dtype),
        grid_spec=pltpu.PrefetchScalarGridSpec(
            num_scalar_prefetch=0,
            grid=grid,
            in_specs=[
                pl.BlockSpec((tile_rows, H), lambda i: (i, 0)),   # x (row-streamed)
                _resident_spec((H, M)),                            # W1 (resident)
                _resident_spec((1, M)),                            # b1
                _resident_spec((M, T)),                            # W2 (resident)
                _resident_spec((1, T)),                            # b2
            ],
            out_specs=pl.BlockSpec((tile_rows, T), lambda i: (i, 0)),
        ),
        compiler_params=pltpu.CompilerParams(
            dimension_semantics=("parallel",),
            vmem_limit_bytes=vmem_limit,
        ),
    )(x_tokens, w1b, b1f, w2b, b2f)


# --------------------------------------------------------------------------- #
# Model forward (mode='cal_emissions')
# --------------------------------------------------------------------------- #
def lw_model_cal_emissions(token_ids, attention_masks, token_type_ids, params):
    """Mirror of LW_Model.forward(..., mode='cal_emissions') -> (emissions,)."""
    B, S = token_ids.shape
    # TODO(synk): stand-in for the pretrained HuggingFace BertModel backbone; real
    # BERT consumes attention_masks inside self-attention (on the scores), not on
    # hidden states — the 0/1 mask folded below is producer-side glue only.
    emb = (params["word_emb"][token_ids]
           + params["pos_emb"][jnp.arange(S)][None, :, :]
           + params["type_emb"][token_type_ids])
    H = emb.shape[-1]
    mask = attention_masks.astype(emb.dtype)[..., None]
    # Fold the mask into the producer epilogue and emit bf16 directly; XLA fuses
    # this into the embedding computation so the kernel reads half-width x and no
    # separate mask operand / extra HBM pass is needed.
    x_tokens = (emb * mask).astype(jnp.bfloat16).reshape(B * S, H)

    emissions_flat = lw_head(x_tokens,
                             params["w1"], params["b1"],
                             params["w2"], params["b2"])
    num_tags = params["w2"].shape[1]
    return (emissions_flat.reshape(B, S, num_tags),)


if __name__ == "__main__":
    # Small shapes consistent with the module
    B, S = 2, 8                 # batch, sequence length
    H = 32                      # bert_config.hidden_size (synthetic)
    MID = 128                   # mid_linear_dims (module default)
    NUM_TAGS = 8                # num_tags
    VOCAB = 100

    key = jax.random.PRNGKey(0)
    k_tok, k_wemb, k_pemb, k_temb, k_w1, k_w2 = jax.random.split(key, 6)

    token_ids = jax.random.randint(k_tok, (B, S), 0, VOCAB, dtype=jnp.int32)
    attention_masks = jnp.ones((B, S), dtype=jnp.int32)
    token_type_ids = jnp.zeros((B, S), dtype=jnp.int32)

    init_range = 0.02           # bert_config.initializer_range
    params = {
        # synthetic BERT-embedding stand-in
        "word_emb": init_range * jax.random.normal(k_wemb, (VOCAB, H), jnp.float32),
        "pos_emb":  init_range * jax.random.normal(k_pemb, (S, H), jnp.float32),
        "type_emb": init_range * jax.random.normal(k_temb, (2, H), jnp.float32),
        # mid_linear / classifier, init matching _init_weights (zero biases)
        "w1": init_range * jax.random.normal(k_w1, (H, MID), jnp.float32),
        "b1": jnp.zeros((MID,), jnp.float32),
        "w2": init_range * jax.random.normal(k_w2, (MID, NUM_TAGS), jnp.float32),
        "b2": jnp.zeros((NUM_TAGS,), jnp.float32),
    }

    model = jax.jit(lw_model_cal_emissions)
    (emissions,) = model(token_ids, attention_masks, token_type_ids, params)
    emissions = jax.block_until_ready(emissions)

    # bf16-matched pure-JAX reference for the fused head (same mixed precision)
    emb_ref = (params["word_emb"][token_ids]
               + params["pos_emb"][jnp.arange(S)][None, :, :]
               + params["type_emb"][token_type_ids])
    xb = (emb_ref * attention_masks[..., None].astype(jnp.float32)) \
        .astype(jnp.bfloat16).reshape(B * S, H)
    h_ref = jnp.maximum(
        jnp.dot(xb, params["w1"].astype(jnp.bfloat16),
                preferred_element_type=jnp.float32) + params["b1"][None, :], 0.0)
    e_ref = (jnp.dot(h_ref.astype(jnp.bfloat16), params["w2"].astype(jnp.bfloat16),
                     preferred_element_type=jnp.float32) + params["b2"][None, :])
    emissions_ref = e_ref.reshape(B, S, NUM_TAGS)

    assert emissions.shape == (B, S, NUM_TAGS)
    max_err = float(jnp.max(jnp.abs(emissions - emissions_ref)))
    assert jnp.allclose(emissions, emissions_ref, atol=1e-5, rtol=1e-2), max_err
    print("KERNEL_OK")
</pallas_src>

<mosaic_0001>
module attributes {stable_mosaic.version = 11 : i64} {
  func.func @lw_head_kernel(%arg0: i32, %arg1: memref<16x32xbf16, #tpu.memory_space<vmem>>, %arg2: memref<32x128xbf16, #tpu.memory_space<vmem>>, %arg3: memref<1x128xf32, #tpu.memory_space<vmem>>, %arg4: memref<128x8xbf16, #tpu.memory_space<vmem>>, %arg5: memref<1x8xf32, #tpu.memory_space<vmem>>, %arg6: memref<16x8xf32, #tpu.memory_space<vmem>>) attributes {dimension_semantics = [#tpu.dimension_semantics<parallel>], iteration_bounds = array<i64: 1>, scalar_prefetch = 0 : i64, scratch_operands = 0 : i64, tpu.core_type = #tpu.core_type<tc>, window_params = [{transform_indices = @transform_0, window_bounds = array<i64: 16, 32>}, {pipeline_mode = #tpu.pipeline_mode<synchronous>, transform_indices = @transform_1, window_bounds = array<i64: 32, 128>}, {pipeline_mode = #tpu.pipeline_mode<synchronous>, transform_indices = @transform_2, window_bounds = array<i64: 1, 128>}, {pipeline_mode = #tpu.pipeline_mode<synchronous>, transform_indices = @transform_3, window_bounds = array<i64: 128, 8>}, {pipeline_mode = #tpu.pipeline_mode<synchronous>, transform_indices = @transform_4, window_bounds = array<i64: 1, 8>}, {transform_indices = @transform_5, window_bounds = array<i64: 16, 8>}]} {
    %c0 = arith.constant 0 : index
    %c0_0 = arith.constant 0 : index
    %0 = vector.load %arg1[%c0, %c0_0] : memref<16x32xbf16, #tpu.memory_space<vmem>>, vector<16x32xbf16>
    %c0_1 = arith.constant 0 : index
    %c0_2 = arith.constant 0 : index
    %1 = vector.load %arg2[%c0_1, %c0_2] : memref<32x128xbf16, #tpu.memory_space<vmem>>, vector<32x128xbf16>
    %cst = arith.constant dense<0.000000e+00> : vector<16x128xf32>
    %2 = tpu.matmul %0, %1, %cst {dimension_numbers = #tpu.dot_dimension_numbers<[1], [0], [0], [1], [0, 0, 1, 1], [], []>} : vector<16x32xbf16>, vector<32x128xbf16>, vector<16x128xf32> -> vector<16x128xf32>
    %c0_3 = arith.constant 0 : index
    %c0_4 = arith.constant 0 : index
    %3 = vector.load %arg3[%c0_3, %c0_4] : memref<1x128xf32, #tpu.memory_space<vmem>>, vector<1x128xf32>
    %4 = vector.broadcast %3 : vector<1x128xf32> to vector<16x128xf32>
    %5 = arith.addf %2, %4 : vector<16x128xf32>
    %cst_5 = arith.constant 0.000000e+00 : f32
    %6 = vector.broadcast %cst_5 : f32 to vector<16x128xf32>
    %7 = arith.maximumf %5, %6 : vector<16x128xf32>
    %8 = arith.truncf %7 : vector<16x128xf32> to vector<16x128xbf16>
    %c0_6 = arith.constant 0 : index
    %c0_7 = arith.constant 0 : index
    %9 = vector.load %arg4[%c0_6, %c0_7] : memref<128x8xbf16, #tpu.memory_space<vmem>>, vector<128x8xbf16>
    %cst_8 = arith.constant dense<0.000000e+00> : vector<16x8xf32>
    %10 = tpu.matmul %8, %9, %cst_8 {dimension_numbers = #tpu.dot_dimension_numbers<[1], [0], [0], [1], [0, 0, 1, 1], [], []>} : vector<16x128xbf16>, vector<128x8xbf16>, vector<16x8xf32> -> vector<16x8xf32>
    %c0_9 = arith.constant 0 : index
    %c0_10 = arith.constant 0 : index
    %11 = vector.load %arg5[%c0_9, %c0_10] : memref<1x8xf32, #tpu.memory_space<vmem>>, vector<1x8xf32>
    %12 = vector.broadcast %11 : vector<1x8xf32> to vector<16x8xf32>
    %13 = arith.addf %10, %12 : vector<16x8xf32>
    %c0_11 = arith.constant 0 : index
    %c0_12 = arith.constant 0 : index
    %14 = vector.load %arg6[%c0_11, %c0_12] : memref<16x8xf32, #tpu.memory_space<vmem>>, vector<16x8xf32>
    tpu.vector_store %arg6[%c0_11, %c0_12], %13 {strides = array<i32>} : memref<16x8xf32, #tpu.memory_space<vmem>>, vector<16x8xf32>,
    return
  }
  func.func @transform_0(%arg0: i32) -> (i32, i32) {
    %c0_i32 = arith.constant 0 : i32
    %c0_i32_0 = arith.constant 0 : i32
    return %arg0, %c0_i32 : i32, i32
  }
  func.func @transform_1(%arg0: i32) -> (i32, i32) {
    %c0_i32 = arith.constant 0 : i32
    %c0_i32_0 = arith.constant 0 : i32
    %c0_i32_1 = arith.constant 0 : i32
    return %c0_i32, %c0_i32_0 : i32, i32
  }
  func.func @transform_2(%arg0: i32) -> (i32, i32) {
    %c0_i32 = arith.constant 0 : i32
    %c0_i32_0 = arith.constant 0 : i32
    %c0_i32_1 = arith.constant 0 : i32
    return %c0_i32, %c0_i32_0 : i32, i32
  }
  func.func @transform_3(%arg0: i32) -> (i32, i32) {
    %c0_i32 = arith.constant 0 : i32
    %c0_i32_0 = arith.constant 0 : i32
    %c0_i32_1 = arith.constant 0 : i32
    return %c0_i32, %c0_i32_0 : i32, i32
  }
  func.func @transform_4(%arg0: i32) -> (i32, i32) {
    %c0_i32 = arith.constant 0 : i32
    %c0_i32_0 = arith.constant 0 : i32
    %c0_i32_1 = arith.constant 0 : i32
    return %c0_i32, %c0_i32_0 : i32, i32
  }
  func.func @transform_5(%arg0: i32) -> (i32, i32) {
    %c0_i32 = arith.constant 0 : i32
    %c0_i32_0 = arith.constant 0 : i32
    return %arg0, %c0_i32 : i32, i32
  }
}

</mosaic_0001>

<llo_original>
// kernel: lw_model_cal_emissions.1
$region0: #{lw_model_cal_emissions.1}
  #allocation0 [shape = 'u32[]', space=smem, size = 0x4, offset = 0x4, fixed_abs, tag = 'smem constant byte address 0x4 - core index']
  #allocation1 [shape = 'u32[144,128]{1,0:T(1,128)}', space=vmem, size = 0x12000, scoped, tag = 'internal scratch']
  %s0 = inlined_call_operand.vmem [shape: bf16[16,32], index: 0, kind: input, shape index: {}]
  %s1 = inlined_call_operand.vmem [shape: bf16[32,128], index: 1, kind: input, shape index: {}]
  %s2 = inlined_call_operand.vmem [shape: f32[1,128], index: 2, kind: input, shape index: {}]
  %s3 = inlined_call_operand.vmem [shape: bf16[128,8], index: 3, kind: input, shape index: {}]
  %s4 = inlined_call_operand.vmem [shape: f32[1,8], index: 4, kind: input, shape index: {}]
  %s5 = inlined_call_operand.hbm [shape: f32[16,8], index: 5, kind: output, shape index: {}]
  %s6 = sld [smem:[#allocation0]]
  $region30: #{lw_model_cal_emissions.1} parent=0
    _
  %s8 = ssub.s32 1, %s6
  %s9 = scalar_select 0, %s8, %s6
  $region1: #{lw_model_cal_emissions.1} parent=0
    #allocation2 [shape = 'u8[8192]{0}', space=vmem, size = 0x2000, scoped, tag = 'output window, operand 0, single buffered']
    #allocation3 [shape = 's32[1]{0}', space=sflag, size = 0x4, scoped, tag = 'scoped memory for lw_model_cal_emissions.1']
    %10 = vsyncpa [#allocation3], 0
    // Predicated region
    $region2: #{lw_model_cal_emissions.1} parent=1 // pred_check
      _
    $region3: #{lw_model_cal_emissions.1} parent=1 // pred_check_branch
      %12 = sbr.rel (0) target = $region5
    $region4: #{lw_model_cal_emissions.1} parent=1 // pred_region
      _
    $region5: #{lw_model_cal_emissions.1} parent=1 // pred_fallthru
      _
    // Predicated region
    $region6: #{lw_model_cal_emissions.1} parent=1 // pred_check
      _
    $region7: #{lw_model_cal_emissions.1} parent=1 // pred_check_branch
      %14 = sbr.rel (0) target = $region9
    $region8: #{lw_model_cal_emissions.1} parent=1 // pred_region
      _
    $region9: #{lw_model_cal_emissions.1} parent=1 // pred_fallthru
      _
    // Predicated region
    $region10: #{lw_model_cal_emissions.1} parent=1 // pred_check
      _
    $region11: #{lw_model_cal_emissions.1} parent=1 // pred_check_branch
      %16 = sbr.rel (0) target = $region13
    $region12: #{lw_model_cal_emissions.1} parent=1 // pred_region
      _
    $region13: #{lw_model_cal_emissions.1} parent=1 // pred_fallthru
      _
    // Predicated region
    $region14: #{lw_model_cal_emissions.1} parent=1 // pred_check
      _
    $region15: #{lw_model_cal_emissions.1} parent=1 // pred_check_branch
      %18 = sbr.rel (0) target = $region17
    $region16: #{lw_model_cal_emissions.1} parent=1 // pred_region
      _
    $region17: #{lw_model_cal_emissions.1} parent=1 // pred_fallthru
      _
    // Predicated region
    $region18: #{lw_model_cal_emissions.1} parent=1 // pred_check
      _
    $region19: #{lw_model_cal_emissions.1} parent=1 // pred_check_branch
      %20 = sbr.rel (0) target = $region21
    $region20: #{lw_model_cal_emissions.1} parent=1 // pred_region
      _
    $region21: #{lw_model_cal_emissions.1} parent=1 // pred_fallthru
      _
    %v22 = vld [vmem:[%s0] sm:$0xf]
    %v23 = vld [vmem:[%s0 + $0x4] sm:$0xf]
    %v24 = vld [vmem:[%s1] sm:$0xf]
    %v25 = vld [vmem:[%s1 + $0x4] sm:$0xf]
    %v26 = vld [vmem:[%s1 + $0x8] sm:$0xf]
    %v27 = vld [vmem:[%s1 + $0xc] sm:$0xf]
    %v28 = vld [vmem:[%s2] sm:$0x1]
    %v30 = vlaneseq
    %v31 = vshrl.u32 %v30, 7
    %v32 = vsub.s32 0, %v31
    %v33 = vrot.slane %v28, %v32
    %v37 = vunpack.c.l.b16 %v22
    %v38 = vunpack.c.l.b16 %v23
    %v39 = vpack.c.b16 %v38, %v37
    %v44 = vunpack.c.l.b16 %v24
    %v45 = vunpack.c.l.b16 %v25
    %v46 = vunpack.c.l.b16 %v26
    %v47 = vunpack.c.l.b16 %v27
    %v48 = vpack.c.b16 %v45, %v44
    %v49 = vpack.c.b16 %v47, %v46
    %vm52 = vcmask 261120
    %v54 = vsel %vm52, %v39, 0
    %56 = vmatprep.subr.bf16.mxu0 0
    %57 = vmatpush1.bf16.msra.mxu0 %v48
    %58 = vmatprep.subr.bf16.mxu0 0
    %59 = vmatpush1.bf16.msra.mxu0 %v49
    %60 = vmatprep.subr.bf16.mxu0 0
    %61 = vmatpush1.bf16.msra.mxu0 0
    %62 = vmatprep.subr.bf16.mxu0 0
    %63 = vmatpush1.bf16.msra.mxu0 0
    %64 = vmatprep.subr.bf16.mxu0 0
    %65 = vmatpush1.bf16.msra.mxu0 0
    %66 = vmatprep.subr.bf16.mxu0 0
    %67 = vmatpush1.bf16.msra.mxu0 0
    %68 = vmatprep.subr.bf16.mxu0 0
    %69 = vmatpush1.bf16.msra.mxu0 0
    %70 = vmatprep.subr.bf16.mxu0 0
    %71 = vmatpush1.bf16.msra.mxu0 0
    %72 = vmatprep.subr.bf16.mxu0 0
    %73 = vmatpush1.bf16.msra.mxu0 0
    %74 = vmatprep.subr.bf16.mxu0 0
    %75 = vmatpush1.bf16.msra.mxu0 0
    %76 = vmatprep.subr.bf16.mxu0 0
    %77 = vmatpush1.bf16.msra.mxu0 0
    %78 = vmatprep.subr.bf16.mxu0 0
    %79 = vmatpush1.bf16.msra.mxu0 0
    %80 = vmatprep.subr.bf16.mxu0 0
    %81 = vmatpush1.bf16.msra.mxu0 0
    %82 = vmatprep.subr.bf16.mxu0 0
    %83 = vmatpush1.bf16.msra.mxu0 0
    %84 = vmatprep.subr.bf16.mxu0 0
    %85 = vmatpush1.bf16.msra.mxu0 0
    %86 = vmatprep.subr.bf16.mxu0 0
    %87 = vmatpush1.bf16.msra.mxu0 0
    %88 = vmatprep.mubr.bf16.mxu0 0
    %89 = vmatmul.mubr.bf16.gmra.mrb[0].mxu0 %v54
    %v90 = vpop.f32.mrb[0].mxu0
    %v91 = vadd.f32 %v33, %v90
    %v92 = vpop.f32.mrb[0].mxu0
    %v93 = vpop.f32.mrb[0].mxu0
    %v94 = vadd.f32 %v33, %v93
    %v95 = vpop.f32.mrb[0].mxu0
    %96 = vdwg.mxu0
    %v97 = vmax.f32 %v91, 0.0
    %v98 = vmax.f32 %v94, 0.0
    %v99 = vpack.c.bf16 %v98, %v97
    %v100 = vld [vmem:[%s3] sm:$0xf]
    %v101 = vld [vmem:[%s3 + $0x4] sm:$0xf]
    %v102 = vld [vmem:[%s3 + $0x8] sm:$0xf]
    %v103 = vld [vmem:[%s3 + $0xc] sm:$0xf]
    %v104 = vld [vmem:[%s3 + $0x10] sm:$0xf]
    %v105 = vld [vmem:[%s3 + $0x14] sm:$0xf]
    %v106 = vld [vmem:[%s3 + $0x18] sm:$0xf]
    %v107 = vld [vmem:[%s3 + $0x1c] sm:$0xf]
    %v108 = vld [vmem:[%s3 + $0x20] sm:$0xf]
    %v109 = vld [vmem:[%s3 + $0x24] sm:$0xf]
    %v110 = vld [vmem:[%s3 + $0x28] sm:$0xf]
    %v111 = vld [vmem:[%s3 + $0x2c] sm:$0xf]
    %v112 = vld [vmem:[%s3 + $0x30] sm:$0xf]
    %v113 = vld [vmem:[%s3 + $0x34] sm:$0xf]
    %v114 = vld [vmem:[%s3 + $0x38] sm:$0xf]
    %v115 = vld [vmem:[%s3 + $0x3c] sm:$0xf]
    %v116 = vld [vmem:[%s4] sm:$0x1]
    %v118 = vlaneseq
    %v119 = vshrl.u32 %v118, 7
    %v120 = vsub.s32 0, %v119
    %v121 = vrot.slane %v116, %v120
    %v139 = vunpack.c.l.b16 %v100
    %v140 = vunpack.c.l.b16 %v101
    %v141 = vunpack.c.l.b16 %v102
    %v142 = vunpack.c.l.b16 %v103
    %v143 = vunpack.c.l.b16 %v104
    %v144 = vunpack.c.l.b16 %v105
    %v145 = vunpack.c.l.b16 %v106
    %v146 = vunpack.c.l.b16 %v107
    %v147 = vunpack.c.l.b16 %v108
    %v148 = vunpack.c.l.b16 %v109
    %v149 = vunpack.c.l.b16 %v110
    %v150 = vunpack.c.l.b16 %v111
    %v151 = vunpack.c.l.b16 %v112
    %v152 = vunpack.c.l.b16 %v113
    %v153 = vunpack.c.l.b16 %v114
    %v154 = vunpack.c.l.b16 %v115
    %v155 = vpack.c.b16 %v140, %v139
    %v156 = vpack.c.b16 %v142, %v141
    %v157 = vpack.c.b16 %v144, %v143
    %v158 = vpack.c.b16 %v146, %v145
    %v159 = vpack.c.b16 %v148, %v147
    %v160 = vpack.c.b16 %v150, %v149
    %v161 = vpack.c.b16 %v152, %v151
    %v162 = vpack.c.b16 %v154, %v153
    %171 = vmatprep.subr.bf16.mxu0 0
    %172 = vmatpush1.bf16.msra.mxu0 %v155
    %173 = vmatprep.subr.bf16.mxu0 0
    %174 = vmatpush1.bf16.msra.mxu0 %v156
    %175 = vmatprep.subr.bf16.mxu0 0
    %176 = vmatpush1.bf16.msra.mxu0 %v157
    %177 = vmatprep.subr.bf16.mxu0 0
    %178 = vmatpush1.bf16.msra.mxu0 %v158
    %179 = vmatprep.subr.bf16.mxu0 0
    %180 = vmatpush1.bf16.msra.mxu0 %v159
    %181 = vmatprep.subr.bf16.mxu0 0
    %182 = vmatpush1.bf16.msra.mxu0 %v160
    %183 = vmatprep.subr.bf16.mxu0 0
    %184 = vmatpush1.bf16.msra.mxu0 %v161
    %185 = vmatprep.subr.bf16.mxu0 0
    %186 = vmatpush1.bf16.msra.mxu0 %v162
    %187 = vmatprep.subr.bf16.mxu0 0
    %188 = vmatpush1.bf16.msra.mxu0 0
    %189 = vmatprep.subr.bf16.mxu0 0
    %190 = vmatpush1.bf16.msra.mxu0 0
    %191 = vmatprep.subr.bf16.mxu0 0
    %192 = vmatpush1.bf16.msra.mxu0 0
    %193 = vmatprep.subr.bf16.mxu0 0
    %194 = vmatpush1.bf16.msra.mxu0 0
    %195 = vmatprep.subr.bf16.mxu0 0
    %196 = vmatpush1.bf16.msra.mxu0 0
    %197 = vmatprep.subr.bf16.mxu0 0
    %198 = vmatpush1.bf16.msra.mxu0 0
    %199 = vmatprep.subr.bf16.mxu0 0
    %200 = vmatpush1.bf16.msra.mxu0 0
    %201 = vmatprep.subr.bf16.mxu0 0
    %202 = vmatpush1.bf16.msra.mxu0 0
    %203 = vmatprep.mubr.bf16.mxu0 0
    %204 = vmatmul.mubr.bf16.gmra.mrb[0].mxu0 %v99
    %v205 = vpop.f32.mrb[0].mxu0
    %v206 = vadd.f32 %v121, %v205
    %v207 = vpop.f32.mrb[0].mxu0
    %v208 = vpop.f32.mrb[0].mxu0
    %v209 = vadd.f32 %v121, %v208
    %v210 = vpop.f32.mrb[0].mxu0
    %211 = vdwg.mxu0
    %vm212 = vcmask 64512
    %213 = vst.msk [vmem:[#allocation2] sm:$0xff] %vm212, %v206
    %214 = vst.msk [vmem:[#allocation2 + $0x8] sm:$0xff] %vm212, %v209
    // Predicated region
    $region22: #{lw_model_cal_emissions.1} parent=1 // pred_check
      _
    $region23: #{lw_model_cal_emissions.1} parent=1 // pred_check_branch
      %216 = sbr.rel (0) target = $region25
    $region24: #{lw_model_cal_emissions.1} parent=1 // pred_region
      %s218 = ssub.s32 256, 256
      %219 = vsyncadd [#allocation3], %s218
      %s220 = sshll.u32 [#allocation2], 4
      %s221 = int_to_ptr.vmem [resolvable:$true] %s220
      %226 = dma.vmem_to_hbm [thread:$0]  %s221, 256, %s5, [#allocation3], 128, 128, 8
    $region25: #{lw_model_cal_emissions.1} parent=1 // pred_fallthru
      _
    // Predicated region
    $region26: #{lw_model_cal_emissions.1} parent=1 // pred_check
      _
    $region27: #{lw_model_cal_emissions.1} parent=1 // pred_check_branch
      %228 = sbr.rel (0) target = $region29
    $region28: #{lw_model_cal_emissions.1} parent=1 // pred_region
      %229 = dma.done [#allocation3], 256
    $region29: #{lw_model_cal_emissions.1} parent=1 // pred_fallthru
      _
    %230 = vsyncpa [#allocation3], 1

</llo_original>
